<compile_context>
chip_gen: v7x
topology: tpu7x:2x2x1
jax: 0.10.0
libtpu: 0.0.40
codegen_flags: <defaults>
</compile_context>

<pallas_src>
import functools

import jax
import jax.numpy as jnp
from jax import lax
from jax.experimental import pallas as pl
from jax.experimental.pallas import tpu as pltpu

_LOG2E = 1.4426950408889634  # log2(e)


def _round_up(v, m):
    return ((v + m - 1) // m) * m


def _balanced_tile(size, unit, cap):
    """Tile size: multiple of `unit`, <= min(size, cap), balanced so the trailing
    partial tile is not nearly empty.  Returns `size` itself when size <= unit
    (full-extent blocks are always legal)."""
    if size <= unit:
        return size
    num = -(-size // cap)
    while True:
        t = _round_up(-(-size // num), unit)
        if t <= size:
            return min(t, cap)
        num += 1


def _ce_tiles(n, d, itemsize):
    # Feature (lane) axis: prefer wider/shorter blocks once D >= 4096.
    td = _balanced_tile(d, 128, 4096 if d >= 4096 else 2048)
    # Row (sublane) axis: keep the f32 tile at ~<= 4 MiB per buffer; use a 16-row
    # unit for sub-32-bit inputs so bf16 sublane packing stays aligned.
    row_unit = 16 if itemsize < 4 else 8
    tm_cap = 256 if td > 2048 else 512
    tm = _balanced_tile(n, row_unit, tm_cap)
    return tm, td


def _ce_denom_kernel(x_ref, dsum_ref, *, n, d, tm, td, num_j):
    """Accumulate the exp-sum of one (tm, td) tile into this row-tile's (8,128)
    lane-dense partial-sum block (resident across the D grid axis)."""
    i = pl.program_id(0)  # row-tile index ("parallel")
    j = pl.program_id(1)  # feature-tile index (reduction, innermost, "arbitrary")

    @pl.when(j == 0)
    def _():
        dsum_ref[...] = jnp.zeros_like(dsum_ref)

    ragged_rows = (n % tm) != 0
    ragged_cols = (d % td) != 0
    fast = (td % 128 == 0) and (tm % 8 == 0)

    if fast:
        nlg = td // 128
        # Columns >= d can only appear in the LAST j-tile, and there only in lane
        # groups past this statically known threshold -> only mask those groups.
        if ragged_cols:
            first_maybe_invalid_group = (d - (num_j - 1) * td) // 128
        else:
            first_maybe_invalid_group = nlg

        acc = None  # (tm, 128) running per-lane-group sum (pure VPU adds)
        for k in range(nlg):
            xk = x_ref[:, 128 * k:128 * (k + 1)].astype(jnp.float32)  # (tm, 128)
            ek = jnp.exp(xk)
            if k >= first_maybe_invalid_group:
                col_ids = (j * td + 128 * k
                           + lax.broadcasted_iota(jnp.int32, (tm, 128), 1))
                ek = jnp.where(col_ids < d, ek, 0.0)
            acc = ek if acc is None else acc + ek

        if ragged_rows:
            # Rows never mix before this point, so masking once after the lane fold
            # is enough to kill any garbage (inf/nan) from the padded boundary rows.
            row_ids = i * tm + lax.broadcasted_iota(jnp.int32, (tm, 128), 0)
            acc = jnp.where(row_ids < n, acc, 0.0)

        # Sublane fold (tm,128) -> (8,128): pure vreg adds, then one full-vreg RMW.
        red = acc[0:8, :]
        for r in range(1, tm // 8):
            red = red + acc[8 * r:8 * (r + 1), :]
        dsum_ref[...] = dsum_ref[...] + red
    else:
        # Tiny-dimension fallback (n < sublane unit or d <= 128 / odd): let Mosaic do
        # the generic reduce -- negligible work at these sizes.
        x = x_ref[...].astype(jnp.float32)
        e = jnp.exp(x)
        masks = []
        if ragged_cols:
            col_ids = j * td + lax.broadcasted_iota(jnp.int32, (tm, td), 1)
            masks.append(col_ids < d)
        if ragged_rows:
            row_ids = i * tm + lax.broadcasted_iota(jnp.int32, (tm, td), 0)
            masks.append(row_ids < n)
        if masks:
            valid = masks[0] if len(masks) == 1 else jnp.logical_and(masks[0], masks[1])
            e = jnp.where(valid, e, 0.0)
        s = jnp.sum(e)
        onehot = jnp.logical_and(
            lax.broadcasted_iota(jnp.int32, (8, 128), 0) == 0,
            lax.broadcasted_iota(jnp.int32, (8, 128), 1) == 0)
        dsum_ref[...] = dsum_ref[...] + jnp.where(onehot, s, 0.0)


def custom_cross_entropy_loss(inputs, targets, weight=1.0, reduction="mean"):
    """inputs: (N, ...) float (any dtype); targets: (N,) int class indices."""
    n = inputs.shape[0]
    x = inputs.reshape(n, -1)                       # native dtype; cast per group in-kernel
    d = x.shape[1]
    t = targets.reshape(n, 1).astype(jnp.int32)

    tm, td = _ce_tiles(n, d, x.dtype.itemsize)
    num_i = pl.cdiv(n, tm)
    num_j = pl.cdiv(d, td)

    kernel = functools.partial(_ce_denom_kernel, n=n, d=d, tm=tm, td=td, num_j=num_j)

    denom_parts = pl.pallas_call(
        kernel,
        grid=(num_i, num_j),
        in_specs=[pl.BlockSpec((tm, td), lambda i, j: (i, j))],
        # One lane-dense (8,128) partial per row tile, resident across the D axis.
        out_specs=pl.BlockSpec((None, 8, 128), lambda i, j: (i, 0, 0)),
        out_shape=jax.ShapeDtypeStruct((num_i, 8, 128), jnp.float32),
        compiler_params=pltpu.CompilerParams(
            # Row tiles are independent (disjoint partial outputs) -> megacore-shard
            # them on v7x; the reduction axis stays sequential.
            dimension_semantics=("parallel", "arbitrary"),
            vmem_limit_bytes=32 * 1024 * 1024,
        ),
        cost_estimate=pl.CostEstimate(
            flops=3 * n * d,
            transcendentals=n * d,
            bytes_accessed=n * d * x.dtype.itemsize + num_i * 8 * 128 * 4,
        ),
    )(x)

    # Epilogue (O(N) / O(num_tiles) work):
    denom = jnp.sum(denom_parts)
    # Target-logit gather kept out of the streaming kernel (per perf review it is pure
    # extra VALU work in-kernel on v7x and is only O(N) anyway).
    gathered = jnp.take_along_axis(x, t, axis=1).astype(jnp.float32)   # (n, 1)

    logs = jnp.maximum(gathered * _LOG2E - jnp.log2(denom), -100.0)
    loss = -weight * logs
    if reduction == "mean":
        return jnp.mean(loss)
    elif reduction == "sum":
        return jnp.sum(loss)
    # TODO(synk): the PyTorch module implicitly returns None for any other reduction.
    return None


def _reference(inputs, targets, weight=1.0, reduction="mean"):
    n = inputs.shape[0]
    x = inputs.reshape(n, -1).astype(jnp.float32)
    gathered = jnp.take_along_axis(x, targets.reshape(n, 1).astype(jnp.int32), axis=1)
    denom = jnp.sum(jnp.exp(x))
    logs = jnp.maximum(gathered * _LOG2E - jnp.log2(denom), -100.0)
    loss = -weight * logs
    return jnp.mean(loss) if reduction == "mean" else jnp.sum(loss)


if __name__ == "__main__":
    key = jax.random.PRNGKey(0)
    kx, kt = jax.random.split(key)

    # Small single-tile case (typical (batch, num_classes) use) — exercises the
    # full-extent / generic-reduce path.
    N, C = 8, 32
    inputs = jax.random.normal(kx, (N, C), dtype=jnp.float32)
    targets = jax.random.randint(kt, (N,), 0, C, dtype=jnp.int32)
    loss = jax.block_until_ready(
        custom_cross_entropy_loss(inputs, targets, weight=1.0, reduction="mean"))
    ref = _reference(inputs, targets, weight=1.0, reduction="mean")
    assert jnp.allclose(loss, ref, rtol=1e-5, atol=1e-5), (loss, ref)

    # Ragged multi-tile case — exercises balanced tiles (tm=152, td=1152), the
    # lane-dense fast path, row/column boundary masking and the 2x2 grid.
    N2, C2 = 300, 2100
    inputs2 = jax.random.normal(kx, (N2, C2), dtype=jnp.float32)
    targets2 = jax.random.randint(kt, (N2,), 0, C2, dtype=jnp.int32)
    loss2 = jax.block_until_ready(
        custom_cross_entropy_loss(inputs2, targets2, weight=2.0, reduction="sum"))
    ref2 = _reference(inputs2, targets2, weight=2.0, reduction="sum")
    assert jnp.allclose(loss2, ref2, rtol=1e-4, atol=1e-4), (loss2, ref2)

    print("KERNEL_OK")
</pallas_src>

<mosaic_0001>
module attributes {stable_mosaic.version = 11 : i64} {
  func.func @_ce_denom_kernel(%arg0: i32, %arg1: i32, %arg2: memref<8x32xf32, #tpu.memory_space<vmem>>, %arg3: memref<1x8x128xf32, #tpu.memory_space<vmem>>) attributes {dimension_semantics = [#tpu.dimension_semantics<parallel>, #tpu.dimension_semantics<arbitrary>], iteration_bounds = array<i64: 1, 1>, scalar_prefetch = 0 : i64, scratch_operands = 0 : i64, tpu.core_type = #tpu.core_type<tc>, window_params = [{transform_indices = @transform_0, window_bounds = array<i64: 8, 32>}, {transform_indices = @transform_1, window_bounds = array<i64: 1, 8, 128>}]} {
    %c0_i32 = arith.constant 0 : i32
    %0 = arith.cmpi eq, %arg1, %c0_i32 : i32
    %1 = arith.extui %0 : i1 to i32
    %c0_i32_0 = arith.constant 0 : i32
    %2 = arith.cmpi ne, %1, %c0_i32_0 : i32
    scf.if %2 {
      %cst_11 = arith.constant 0.000000e+00 : f32
      %25 = vector.broadcast %cst_11 : f32 to vector<8x128xf32>
      %c0_12 = arith.constant 0 : index
      %c0_13 = arith.constant 0 : index
      %c0_14 = arith.constant 0 : index
      %26 = vector.load %arg3[%c0_12, %c0_13, %c0_14] : memref<1x8x128xf32, #tpu.memory_space<vmem>>, vector<1x8x128xf32>
      %27 = vector.shape_cast %26 : vector<1x8x128xf32> to vector<8x128xf32>
      %28 = vector.shape_cast %25 : vector<8x128xf32> to vector<1x8x128xf32>
      tpu.vector_store %arg3[%c0_12, %c0_13, %c0_14], %28 {strides = array<i32>} : memref<1x8x128xf32, #tpu.memory_space<vmem>>, vector<1x8x128xf32>,
    } else {
    }
    %c0 = arith.constant 0 : index
    %c0_1 = arith.constant 0 : index
    %3 = vector.load %arg2[%c0, %c0_1] : memref<8x32xf32, #tpu.memory_space<vmem>>, vector<8x32xf32>
    %4 = math.exp %3 : vector<8x32xf32>
    %5 = vector.shape_cast %4 : vector<8x32xf32> to vector<1x8x32xf32>
    %cst = arith.constant dense<0.000000e+00> : vector<1xf32>
    %6 = vector.multi_reduction <add>, %5, %cst [1, 2] : vector<1x8x32xf32> to vector<1xf32>
    %7 = vector.shape_cast %6 : vector<1xf32> to vector<1x1x1xf32>
    %8 = vector.extract %7[0, 0, 0] : f32 from vector<1x1x1xf32>
    %9 = tpu.iota {dimensions = array<i32: 0>} : vector<8x128xi32>
    %c0_i32_2 = arith.constant 0 : i32
    %10 = vector.broadcast %c0_i32_2 : i32 to vector<8x128xi32>
    %11 = arith.cmpi eq, %9, %10 : vector<8x128xi32>
    %12 = tpu.iota {dimensions = array<i32: 1>} : vector<8x128xi32>
    %c0_i32_3 = arith.constant 0 : i32
    %13 = vector.broadcast %c0_i32_3 : i32 to vector<8x128xi32>
    %14 = arith.cmpi eq, %12, %13 : vector<8x128xi32>
    %15 = arith.andi %11, %14 : vector<8x128xi1>
    %c0_4 = arith.constant 0 : index
    %c0_5 = arith.constant 0 : index
    %c0_6 = arith.constant 0 : index
    %16 = vector.load %arg3[%c0_4, %c0_5, %c0_6] : memref<1x8x128xf32, #tpu.memory_space<vmem>>, vector<1x8x128xf32>
    %17 = vector.shape_cast %16 : vector<1x8x128xf32> to vector<8x128xf32>
    %cst_7 = arith.constant 0.000000e+00 : f32
    %18 = vector.broadcast %8 : f32 to vector<8x128xf32>
    %19 = vector.broadcast %cst_7 : f32 to vector<8x128xf32>
    %20 = arith.select %15, %18, %19 : vector<8x128xi1>, vector<8x128xf32>
    %21 = arith.addf %17, %20 : vector<8x128xf32>
    %c0_8 = arith.constant 0 : index
    %c0_9 = arith.constant 0 : index
    %c0_10 = arith.constant 0 : index
    %22 = vector.load %arg3[%c0_8, %c0_9, %c0_10] : memref<1x8x128xf32, #tpu.memory_space<vmem>>, vector<1x8x128xf32>
    %23 = vector.shape_cast %22 : vector<1x8x128xf32> to vector<8x128xf32>
    %24 = vector.shape_cast %21 : vector<8x128xf32> to vector<1x8x128xf32>
    tpu.vector_store %arg3[%c0_8, %c0_9, %c0_10], %24 {strides = array<i32>} : memref<1x8x128xf32, #tpu.memory_space<vmem>>, vector<1x8x128xf32>,
    return
  }
  func.func @transform_0(%arg0: i32, %arg1: i32) -> (i32, i32) {
    %c0_i32 = arith.constant 0 : i32
    return %arg0, %arg1 : i32, i32
  }
  func.func @transform_1(%arg0: i32, %arg1: i32) -> (i32, i32, i32) {
    %c0_i32 = arith.constant 0 : i32
    %c0_i32_0 = arith.constant 0 : i32
    %c0_i32_1 = arith.constant 0 : i32
    return %arg0, %c0_i32, %c0_i32_0 : i32, i32, i32
  }
}

</mosaic_0001>

<llo_original>
// kernel: tpu_custom_call.1
$region0: #{tpu_custom_call.1}
  #allocation0 [shape = 'u32[]', space=smem, size = 0x4, offset = 0x4, fixed_abs, tag = 'smem constant byte address 0x4 - core index']
  #allocation1 [shape = 'u32[144,128]{1,0:T(1,128)}', space=vmem, size = 0x12000, scoped, tag = 'internal scratch']
  %s0 = inlined_call_operand.hbm [shape: f32[8,32], index: 0, kind: input, shape index: {}]
  %s1 = inlined_call_operand.hbm [shape: f32[1,8,128], index: 1, kind: output, shape index: {}]
  %s2 = sld [smem:[#allocation0]]
  $region22: #{tpu_custom_call.1} parent=0
    _
  %s4 = ssub.s32 1, %s2
  %s5 = scalar_select 0, %s4, %s2
  $region1: #{tpu_custom_call.1} parent=0
    #allocation2 [shape = 'u8[4096]{0}', space=vmem, size = 0x1000, scoped, tag = 'input window, operand 0, single buffered']
    #allocation3 [shape = 's32[1]{0}', space=sflag, size = 0x4, scoped, tag = 'scoped memory for tpu_custom_call.1']
    #allocation4 [shape = 's32[1]{0}', space=sflag, size = 0x4, scoped, tag = 'scoped memory for tpu_custom_call.1']
    #allocation5 [shape = 'u8[4096]{0}', space=vmem, size = 0x1000, scoped, tag = 'output window, operand 0, single buffered']
    %6 = vsyncpa [#allocation3], 0
    %7 = vsyncpa [#allocation4], 0
    // Predicated region
    $region2: #{tpu_custom_call.1} parent=1 // pred_check
      _
    $region3: #{tpu_custom_call.1} parent=1 // pred_check_branch
      %9 = sbr.rel (0) target = $region5
    $region4: #{tpu_custom_call.1} parent=1 // pred_region
      %s11 = ssub.s32 128, 128
      %12 = vsyncadd [#allocation3], %s11
      %s14 = sshll.u32 [#allocation2], 4
      %s15 = int_to_ptr.vmem [resolvable:$true] %s14
      %17 = dma.hbm_to_vmem [thread:$0]  %s0, 128, %s15, [#allocation3]
    $region5: #{tpu_custom_call.1} parent=1 // pred_fallthru
      _
    // Predicated region
    $region6: #{tpu_custom_call.1} parent=1 // pred_check
      _
    $region7: #{tpu_custom_call.1} parent=1 // pred_check_branch
      %19 = sbr.rel (0) target = $region9
    $region8: #{tpu_custom_call.1} parent=1 // pred_region
      %20 = dma.done [#allocation3], 128
    $region9: #{tpu_custom_call.1} parent=1 // pred_fallthru
      _
    %p21 = scmp.eq.s32.totalorder 0, 0
    // Predicated region
    $region10: #{tpu_custom_call.1} parent=1 // pred_check
      %p22 = pneg %p21
    $region11: #{tpu_custom_call.1} parent=1 // pred_check_branch
      %24 = sbr.rel (%p22) target = $region13
    $region12: #{tpu_custom_call.1} parent=1 // pred_region
      %25 = vst [vmem:[#allocation5] sm:$0xff] 0.0
    $region13: #{tpu_custom_call.1} parent=1 // pred_fallthru
      _
    %v26 = vld [vmem:[#allocation2] sm:$0xff]
    %v27 = vmul.f32 %v26, 1.442695
    %v28 = vpow.pop %v27
    %vm29 = vcmask 261120
    %v30 = vsel %vm29, %v28, 0.0
    %31 = vadd.xlane.f32.xlu0 %v30
    %v32 = vpop.xlane.xlu0 %31
    %v33 = vrot.slane %v32, 4
    %v34 = vadd.f32 %v32, %v33
    %v35 = vrot.slane %v34, 2
    %v36 = vadd.f32 %v34, %v35
    %v37 = vrot.slane %v36, 1
    %v38 = vadd.f32 %v36, %v37
    %s39 = vtos %v38
    %v40 = vlaneseq
    %v41 = vshrl.u32 %v40, 7
    %vm42 = vcmp.eq.s32.totalorder %v41, 0
    %v43 = vlaneseq
    %v44 = vand.u32 %v43, 127
    %vm45 = vcmp.eq.s32.totalorder %v44, 0
    %vm46 = vmand %vm42, %vm45
    %v47 = vld [vmem:[#allocation5] sm:$0xff]
    %v48 = vstv %s39
    %v49 = vsel %vm46, %v48, 0.0
    %v50 = vadd.f32 %v47, %v49
    %51 = vst [vmem:[#allocation5] sm:$0xff] %v50
    // Predicated region
    $region14: #{tpu_custom_call.1} parent=1 // pred_check
      _
    $region15: #{tpu_custom_call.1} parent=1 // pred_check_branch
      %53 = sbr.rel (0) target = $region17
    $region16: #{tpu_custom_call.1} parent=1 // pred_region
      %s55 = ssub.s32 128, 128
      %56 = vsyncadd [#allocation4], %s55
      %s58 = sshll.u32 [#allocation5], 4
      %s59 = int_to_ptr.vmem [resolvable:$true] %s58
      %61 = dma.vmem_to_hbm [thread:$0]  %s59, 128, %s1, [#allocation4]
    $region17: #{tpu_custom_call.1} parent=1 // pred_fallthru
      _
    // Predicated region
    $region18: #{tpu_custom_call.1} parent=1 // pred_check
      _
    $region19: #{tpu_custom_call.1} parent=1 // pred_check_branch
      %63 = sbr.rel (0) target = $region21
    $region20: #{tpu_custom_call.1} parent=1 // pred_region
      %64 = dma.done [#allocation4], 128
    $region21: #{tpu_custom_call.1} parent=1 // pred_fallthru
      _
    %65 = vsyncpa [#allocation3], 1
    %66 = vsyncpa [#allocation4], 1

</llo_original>
